<compile_context>
chip_gen: v7x
topology: tpu7x:2x2x1
jax: 0.10.0
libtpu: 0.0.40
codegen_flags: <defaults>
</compile_context>

<pallas_src>
import functools

import jax
import jax.numpy as jnp
from jax import lax
from jax.experimental import pallas as pl
from jax.experimental.pallas import tpu as pltpu

LANE = 128


def _round_up(a, m):
    return (a + m - 1) // m * m


def _pick_tile(np_, cap):
    """Largest multiple of 128 that divides np_ and is <= cap (np_ % 128 == 0)."""
    t = min(cap, np_)
    t = (t // LANE) * LANE
    while np_ % t != 0:
        t -= LANE
    return t


def _vmem_capacity_bytes():
    try:
        info = pltpu.get_tpu_info()
        cap = getattr(info, "vmem_capacity_bytes", None)
        if cap:
            return int(cap)
    except Exception:
        pass
    return 64 * 1024 * 1024  # conservative (v7x-sized) fallback


def _pad2(a, rows, cols):
    return lax.pad(
        a,
        jnp.array(0, dtype=a.dtype),
        ((0, rows - a.shape[0], 0), (0, cols - a.shape[1], 0)),
    )


# ---------------------------------------------------------------------------
# Kernel 1: dense projection  p1 = x @ W1^T + b1            (large row tiles)
# ---------------------------------------------------------------------------
def _proj_kernel(x_ref, w_ref, b_ref, out_ref):
    p = jnp.dot(x_ref[...], w_ref[...], preferred_element_type=jnp.float32)
    out_ref[...] = (p + b_ref[...]).astype(out_ref.dtype)


# ---------------------------------------------------------------------------
# Kernel 2: K-tiled adjacency matmul + ReLU, fused with the layer-2 dense
#           projection:  p2_tile = relu(sum_k adj[i,k] @ p1[k]) @ W2^T + b2
# ---------------------------------------------------------------------------
def _layer1_kernel(adj_ref, p1_ref, w2_ref, b2_ref, out_ref, acc_ref):
    k = pl.program_id(1)

    @pl.when(k == 0)
    def _():
        acc_ref[...] = jnp.zeros_like(acc_ref)

    acc_ref[...] += jnp.dot(
        adj_ref[...], p1_ref[...], preferred_element_type=jnp.float32
    )

    @pl.when(k == pl.num_programs(1) - 1)
    def _():
        h = jnp.maximum(acc_ref[...], 0.0).astype(jnp.bfloat16)
        # TODO(synk): training-mode dropout would use pltpu.prng_seed +
        # pltpu.stateful_bernoulli here; eval-mode dropout is the identity.
        p2 = jnp.dot(h, w2_ref[...], preferred_element_type=jnp.float32)
        out_ref[...] = (p2 + b2_ref[...]).astype(out_ref.dtype)


# ---------------------------------------------------------------------------
# Kernel 3: K-tiled adjacency matmul + masked log_softmax over the padded
#           class axis:    out_tile = log_softmax(sum_k adj[i,k] @ p2[k])
# ---------------------------------------------------------------------------
def _layer2_kernel(adj_ref, p2_ref, out_ref, acc_ref, *, num_classes):
    k = pl.program_id(1)

    @pl.when(k == 0)
    def _():
        acc_ref[...] = jnp.zeros_like(acc_ref)

    acc_ref[...] += jnp.dot(
        adj_ref[...], p2_ref[...], preferred_element_type=jnp.float32
    )

    @pl.when(k == pl.num_programs(1) - 1)
    def _():
        z = acc_ref[...]
        col = lax.broadcasted_iota(jnp.int32, z.shape, 1)
        valid = col < num_classes
        zm = jnp.where(valid, z, -1e30)      # keep f32 (no bf16 overflow path)
        m = jnp.max(zm, axis=1, keepdims=True)
        s = zm - m
        e = jnp.where(valid, jnp.exp(s), 0.0)
        lse = jnp.log(jnp.sum(e, axis=1, keepdims=True))
        out_ref[...] = s - lse               # pad lanes sliced off in wrapper


def gcn_forward(x, adj_hat, w1, b1, w2, b2, *, tile_m=None):
    """x: (N, F), adj_hat: (N, N), w1: (H, F), b1: (H,), w2: (C, H), b2: (C,)."""
    N, F = x.shape
    H = w1.shape[0]
    C = w2.shape[0]
    f32, bf16 = jnp.float32, jnp.bfloat16

    # Lane-dense padding: node axis to 128 (NOT to the row tile).
    NP = _round_up(N, LANE)
    Hp = _round_up(H, LANE)
    Cp = _round_up(C, LANE)

    # Per-generation tiling / VMEM budget.
    vmem_cap = _vmem_capacity_bytes()
    if vmem_cap >= 100 * 2**20:          # v5e / v6e: 128 MiB physical VMEM
        tm_default, vmem_limit = 512, 96 * 2**20
    else:                                # v7x: 64 MiB per TC -> leave headroom
        tm_default, vmem_limit = 256, 56 * 2**20

    TM = _pick_tile(NP, tile_m if tile_m is not None else tm_default)
    TK = _pick_tile(NP, 2048)            # contraction tile of the adj matmuls
    TM1 = _pick_tile(NP, 2048)           # big row tile for the cheap projection

    # --- glue: bf16-first adjacency pad (cacheable by the caller), padded
    #           transposed nn.Linear weights (W2 carried in bf16).
    adjp = _pad2(adj_hat.astype(bf16), NP, NP)
    xp = _pad2(x.astype(f32), NP, F)
    w1p = _pad2(w1.T.astype(f32), F, Hp)
    b1p = _pad2(b1.astype(f32).reshape(1, H), 1, Hp)
    w2p = _pad2(w2.T.astype(bf16), Hp, Cp)
    b2p = _pad2(b2.astype(f32).reshape(1, C), 1, Cp)

    params1d = pltpu.CompilerParams(
        dimension_semantics=("parallel",),
        vmem_limit_bytes=vmem_limit,
    )
    params2d = pltpu.CompilerParams(
        dimension_semantics=("parallel", "arbitrary"),   # rows parallel, k reduce
        vmem_limit_bytes=vmem_limit,
    )

    # --- call 1: p1 = x @ W1^T + b1  -> (NP, Hp) bf16 -----------------------
    p1 = pl.pallas_call(
        _proj_kernel,
        out_shape=jax.ShapeDtypeStruct((NP, Hp), bf16),
        grid=(NP // TM1,),
        in_specs=[
            pl.BlockSpec((TM1, F), lambda i: (i, 0)),
            pl.BlockSpec((F, Hp), lambda i: (0, 0)),
            pl.BlockSpec((1, Hp), lambda i: (0, 0)),
        ],
        out_specs=pl.BlockSpec((TM1, Hp), lambda i: (i, 0)),
        compiler_params=params1d,
        cost_estimate=pl.CostEstimate(
            flops=2 * NP * F * Hp,
            transcendentals=0,
            bytes_accessed=4 * NP * F + 4 * F * Hp + 2 * NP * Hp,
        ),
    )(xp, w1p, b1p)

    # --- call 2: p2 = relu(adj @ p1) @ W2^T + b2 -> (NP, Cp) bf16 -----------
    p2 = pl.pallas_call(
        _layer1_kernel,
        out_shape=jax.ShapeDtypeStruct((NP, Cp), bf16),
        grid=(NP // TM, NP // TK),
        in_specs=[
            pl.BlockSpec((TM, TK), lambda i, k: (i, k)),   # adj tile (bf16)
            pl.BlockSpec((TK, Hp), lambda i, k: (k, 0)),   # p1 k-tile
            pl.BlockSpec((Hp, Cp), lambda i, k: (0, 0)),   # W2 (bf16, tiny)
            pl.BlockSpec((1, Cp), lambda i, k: (0, 0)),    # b2
        ],
        out_specs=pl.BlockSpec((TM, Cp), lambda i, k: (i, 0)),
        scratch_shapes=[pltpu.VMEM((TM, Hp), jnp.float32)],
        compiler_params=params2d,
        cost_estimate=pl.CostEstimate(
            flops=2 * NP * NP * Hp + 2 * NP * Hp * Cp,
            transcendentals=0,
            bytes_accessed=2 * NP * NP + 2 * NP * Hp * (NP // TM)
            + 2 * Hp * Cp + 2 * NP * Cp,
        ),
    )(adjp, p1, w2p, b2p)

    # --- call 3: out = log_softmax(adj @ p2) -> (NP, Cp) f32 ----------------
    out = pl.pallas_call(
        functools.partial(_layer2_kernel, num_classes=C),
        out_shape=jax.ShapeDtypeStruct((NP, Cp), f32),
        grid=(NP // TM, NP // TK),
        in_specs=[
            pl.BlockSpec((TM, TK), lambda i, k: (i, k)),
            pl.BlockSpec((TK, Cp), lambda i, k: (k, 0)),
        ],
        out_specs=pl.BlockSpec((TM, Cp), lambda i, k: (i, 0)),
        scratch_shapes=[pltpu.VMEM((TM, Cp), jnp.float32)],
        compiler_params=params2d,
        cost_estimate=pl.CostEstimate(
            flops=2 * NP * NP * Cp,
            transcendentals=NP * Cp + NP,
            bytes_accessed=2 * NP * NP + 2 * NP * Cp * (NP // TM) + 4 * NP * Cp,
        ),
    )(adjp, p2)

    return out[:N, :C]


# ---------------------------------------------------------------------------
# Pure-JAX references
# ---------------------------------------------------------------------------
def gcn_reference_exact(x, adj_hat, w1, b1, w2, b2):
    """Full-f32 math (mirrors the PyTorch forward, minus the f64 upcast)."""
    hi = jax.lax.Precision.HIGHEST
    p1 = jnp.dot(x, w1.T, precision=hi) + b1
    h = jnp.maximum(jnp.dot(adj_hat, p1, precision=hi), 0.0)
    p2 = jnp.dot(h, w2.T, precision=hi) + b2
    z = jnp.dot(adj_hat, p2, precision=hi)
    return jax.nn.log_softmax(z, axis=1)


def gcn_reference_kernel_numerics(x, adj_hat, w1, b1, w2, b2):
    """Mirrors the kernel numerics: bf16 adjacency, bf16 inter-layer
    activations, bf16 h/W2 in the fused epilogue, f32 accumulation."""
    hi = jax.lax.Precision.HIGHEST
    bf16, f32 = jnp.bfloat16, jnp.float32
    adj_bf = adj_hat.astype(bf16)
    p1 = (jnp.dot(x, w1.T, precision=hi) + b1).astype(bf16)
    h = jnp.maximum(jnp.dot(adj_bf, p1, preferred_element_type=f32), 0.0)
    p2 = (
        jnp.dot(h.astype(bf16), w2.T.astype(bf16), preferred_element_type=f32) + b2
    ).astype(bf16)
    z = jnp.dot(adj_bf, p2, preferred_element_type=f32)
    return jax.nn.log_softmax(z, axis=1)


if __name__ == "__main__":
    # Small shapes consistent with the module's forward: N nodes, F features,
    # H hidden units, C classes.
    N, F, H, C = 64, 32, 32, 8

    key = jax.random.PRNGKey(0)
    k_x, k_adj, k_w1, k_b1, k_w2, k_b2 = jax.random.split(key, 6)

    x = jax.random.normal(k_x, (N, F), dtype=jnp.float32)

    # Symmetric normalized adjacency with self-loops (typical GCN adj_hat).
    a = (jax.random.uniform(k_adj, (N, N)) > 0.8).astype(jnp.float32)
    a = jnp.maximum(a, a.T) + jnp.eye(N, dtype=jnp.float32)
    deg_inv_sqrt = 1.0 / jnp.sqrt(a.sum(axis=1))
    adj_hat = a * deg_inv_sqrt[:, None] * deg_inv_sqrt[None, :]

    # Deterministic parameter init (nn.Linear shapes: weight (out, in), bias (out,)).
    w1 = jax.random.normal(k_w1, (H, F), dtype=jnp.float32) * (1.0 / jnp.sqrt(F))
    b1 = jax.random.normal(k_b1, (H,), dtype=jnp.float32) * 0.01
    w2 = jax.random.normal(k_w2, (C, H), dtype=jnp.float32) * (1.0 / jnp.sqrt(H))
    b2 = jax.random.normal(k_b2, (C,), dtype=jnp.float32) * 0.01

    out = gcn_forward(x, adj_hat, w1, b1, w2, b2)
    out = jax.block_until_ready(out)
    assert out.shape == (N, C)

    # 1) Kernel computes what it claims (bf16-matched reference, tight tol).
    ref_k = gcn_reference_kernel_numerics(x, adj_hat, w1, b1, w2, b2)
    assert jnp.allclose(out, ref_k, atol=1e-2, rtol=1e-2), \
        "mismatch vs bf16-matched JAX reference"

    # 2) bf16 quantization error is bounded vs the full-f32 math.
    ref_f = gcn_reference_exact(x, adj_hat, w1, b1, w2, b2)
    assert jnp.allclose(out, ref_f, atol=6e-2, rtol=6e-2), \
        "bf16 kernel drifted too far from f32 reference"

    print("KERNEL_OK")
</pallas_src>

<mosaic_0001>
module attributes {stable_mosaic.version = 11 : i64} {
  func.func @_proj_kernel(%arg0: i32, %arg1: memref<128x32xf32, #tpu.memory_space<vmem>>, %arg2: memref<32x128xf32, #tpu.memory_space<vmem>>, %arg3: memref<1x128xf32, #tpu.memory_space<vmem>>, %arg4: memref<128x128xbf16, #tpu.memory_space<vmem>>) attributes {dimension_semantics = [#tpu.dimension_semantics<parallel>], iteration_bounds = array<i64: 1>, scalar_prefetch = 0 : i64, scratch_operands = 0 : i64, tpu.core_type = #tpu.core_type<tc>, window_params = [{transform_indices = @transform_0, window_bounds = array<i64: 128, 32>}, {pipeline_mode = #tpu.pipeline_mode<synchronous>, transform_indices = @transform_1, window_bounds = array<i64: 32, 128>}, {pipeline_mode = #tpu.pipeline_mode<synchronous>, transform_indices = @transform_2, window_bounds = array<i64: 1, 128>}, {transform_indices = @transform_3, window_bounds = array<i64: 128, 128>}]} {
    %c0 = arith.constant 0 : index
    %c0_0 = arith.constant 0 : index
    %0 = vector.load %arg1[%c0, %c0_0] : memref<128x32xf32, #tpu.memory_space<vmem>>, vector<128x32xf32>
    %c0_1 = arith.constant 0 : index
    %c0_2 = arith.constant 0 : index
    %1 = vector.load %arg2[%c0_1, %c0_2] : memref<32x128xf32, #tpu.memory_space<vmem>>, vector<32x128xf32>
    %cst = arith.constant dense<0.000000e+00> : vector<128x128xf32>
    %2 = tpu.matmul %0, %1, %cst {dimension_numbers = #tpu.dot_dimension_numbers<[1], [0], [0], [1], [0, 0, 1, 1], [], []>} : vector<128x32xf32>, vector<32x128xf32>, vector<128x128xf32> -> vector<128x128xf32>
    %c0_3 = arith.constant 0 : index
    %c0_4 = arith.constant 0 : index
    %3 = vector.load %arg3[%c0_3, %c0_4] : memref<1x128xf32, #tpu.memory_space<vmem>>, vector<1x128xf32>
    %4 = vector.broadcast %3 : vector<1x128xf32> to vector<128x128xf32>
    %5 = arith.addf %2, %4 : vector<128x128xf32>
    %6 = arith.truncf %5 : vector<128x128xf32> to vector<128x128xbf16>
    %c0_5 = arith.constant 0 : index
    %c0_6 = arith.constant 0 : index
    %7 = vector.load %arg4[%c0_5, %c0_6] : memref<128x128xbf16, #tpu.memory_space<vmem>>, vector<128x128xbf16>
    tpu.vector_store %arg4[%c0_5, %c0_6], %6 {strides = array<i32>} : memref<128x128xbf16, #tpu.memory_space<vmem>>, vector<128x128xbf16>,
    return
  }
  func.func @transform_0(%arg0: i32) -> (i32, i32) {
    %c0_i32 = arith.constant 0 : i32
    %c0_i32_0 = arith.constant 0 : i32
    return %arg0, %c0_i32 : i32, i32
  }
  func.func @transform_1(%arg0: i32) -> (i32, i32) {
    %c0_i32 = arith.constant 0 : i32
    %c0_i32_0 = arith.constant 0 : i32
    %c0_i32_1 = arith.constant 0 : i32
    return %c0_i32, %c0_i32_0 : i32, i32
  }
  func.func @transform_2(%arg0: i32) -> (i32, i32) {
    %c0_i32 = arith.constant 0 : i32
    %c0_i32_0 = arith.constant 0 : i32
    %c0_i32_1 = arith.constant 0 : i32
    return %c0_i32, %c0_i32_0 : i32, i32
  }
  func.func @transform_3(%arg0: i32) -> (i32, i32) {
    %c0_i32 = arith.constant 0 : i32
    %c0_i32_0 = arith.constant 0 : i32
    return %arg0, %c0_i32 : i32, i32
  }
}

</mosaic_0001>

<llo_original>
// kernel: tpu_custom_call.1
$region0: #{tpu_custom_call.1}
  #allocation0 [shape = 'u32[]', space=smem, size = 0x4, offset = 0x4, fixed_abs, tag = 'smem constant byte address 0x4 - core index']
  #allocation1 [shape = 'u32[144,128]{1,0:T(1,128)}', space=vmem, size = 0x12000, scoped, tag = 'internal scratch']
  %s0 = inlined_call_operand.vmem [shape: f32[128,32], index: 0, kind: input, shape index: {}]
  %s1 = inlined_call_operand.vmem [shape: f32[32,128], index: 1, kind: input, shape index: {}]
  %s2 = inlined_call_operand.vmem [shape: f32[1,128], index: 2, kind: input, shape index: {}]
  %s3 = inlined_call_operand.hbm [shape: bf16[128,128], index: 3, kind: output, shape index: {}]
  %s4 = sld [smem:[#allocation0]]
  $region22: #{tpu_custom_call.1} parent=0
    _
  %s6 = ssub.s32 1, %s4
  %s7 = scalar_select 0, %s6, %s4
  $region1: #{tpu_custom_call.1} parent=0
    #allocation2 [shape = 'u8[32768]{0}', space=vmem, size = 0x8000, scoped, tag = 'output window, operand 0, single buffered']
    #allocation3 [shape = 's32[1]{0}', space=sflag, size = 0x4, scoped, tag = 'scoped memory for tpu_custom_call.1']
    %8 = vsyncpa [#allocation3], 0
    // Predicated region
    $region2: #{tpu_custom_call.1} parent=1 // pred_check
      _
    $region3: #{tpu_custom_call.1} parent=1 // pred_check_branch
      %10 = sbr.rel (0) target = $region5
    $region4: #{tpu_custom_call.1} parent=1 // pred_region
      _
    $region5: #{tpu_custom_call.1} parent=1 // pred_fallthru
      _
    // Predicated region
    $region6: #{tpu_custom_call.1} parent=1 // pred_check
      _
    $region7: #{tpu_custom_call.1} parent=1 // pred_check_branch
      %12 = sbr.rel (0) target = $region9
    $region8: #{tpu_custom_call.1} parent=1 // pred_region
      _
    $region9: #{tpu_custom_call.1} parent=1 // pred_fallthru
      _
    // Predicated region
    $region10: #{tpu_custom_call.1} parent=1 // pred_check
      _
    $region11: #{tpu_custom_call.1} parent=1 // pred_check_branch
      %14 = sbr.rel (0) target = $region13
    $region12: #{tpu_custom_call.1} parent=1 // pred_region
      _
    $region13: #{tpu_custom_call.1} parent=1 // pred_fallthru
      _
    %v15 = vld [vmem:[%s0] sm:$0xff]
    %v16 = vld [vmem:[%s0 + $0x8] sm:$0xff]
    %v17 = vld [vmem:[%s0 + $0x10] sm:$0xff]
    %v18 = vld [vmem:[%s0 + $0x18] sm:$0xff]
    %v19 = vld [vmem:[%s0 + $0x20] sm:$0xff]
    %v20 = vld [vmem:[%s0 + $0x28] sm:$0xff]
    %v21 = vld [vmem:[%s0 + $0x30] sm:$0xff]
    %v22 = vld [vmem:[%s0 + $0x38] sm:$0xff]
    %v23 = vld [vmem:[%s0 + $0x40] sm:$0xff]
    %v24 = vld [vmem:[%s0 + $0x48] sm:$0xff]
    %v25 = vld [vmem:[%s0 + $0x50] sm:$0xff]
    %v26 = vld [vmem:[%s0 + $0x58] sm:$0xff]
    %v27 = vld [vmem:[%s0 + $0x60] sm:$0xff]
    %v28 = vld [vmem:[%s0 + $0x68] sm:$0xff]
    %v29 = vld [vmem:[%s0 + $0x70] sm:$0xff]
    %v30 = vld [vmem:[%s0 + $0x78] sm:$0xff]
    %v31 = vld [vmem:[%s1] sm:$0xff]
    %v32 = vld [vmem:[%s1 + $0x8] sm:$0xff]
    %v33 = vld [vmem:[%s1 + $0x10] sm:$0xff]
    %v34 = vld [vmem:[%s1 + $0x18] sm:$0xff]
    %v35 = vld [vmem:[%s2] sm:$0x1]
    %v37 = vlaneseq
    %v38 = vshrl.u32 %v37, 7
    %v39 = vsub.s32 0, %v38
    %v40 = vrot.slane %v35, %v39
    %vm42 = vcmask 261120
    %v44 = vsel %vm42, %v15, 0
    %v47 = vsel %vm42, %v16, 0
    %v50 = vsel %vm42, %v17, 0
    %v53 = vsel %vm42, %v18, 0
    %v56 = vsel %vm42, %v19, 0
    %v59 = vsel %vm42, %v20, 0
    %v62 = vsel %vm42, %v21, 0
    %v65 = vsel %vm42, %v22, 0
    %v68 = vsel %vm42, %v23, 0
    %v71 = vsel %vm42, %v24, 0
    %v74 = vsel %vm42, %v25, 0
    %v77 = vsel %vm42, %v26, 0
    %v80 = vsel %vm42, %v27, 0
    %v83 = vsel %vm42, %v28, 0
    %v86 = vsel %vm42, %v29, 0
    %v89 = vsel %vm42, %v30, 0
    %91 = vmatprep.subr.mxu0 0.0
    %92 = vmatpush1.msra.mxu0 %v31
    %93 = vmatprep.subr.mxu0 0.0
    %94 = vmatpush1.msra.mxu0 %v32
    %95 = vmatprep.subr.mxu0 0.0
    %96 = vmatpush1.msra.mxu0 %v33
    %97 = vmatprep.subr.mxu0 0.0
    %98 = vmatpush1.msra.mxu0 %v34
    %99 = vmatprep.subr.mxu0 0.0
    %100 = vmatpush1.msra.mxu0 0.0
    %101 = vmatprep.subr.mxu0 0.0
    %102 = vmatpush1.msra.mxu0 0.0
    %103 = vmatprep.subr.mxu0 0.0
    %104 = vmatpush1.msra.mxu0 0.0
    %105 = vmatprep.subr.mxu0 0.0
    %106 = vmatpush1.msra.mxu0 0.0
    %107 = vmatprep.subr.mxu0 0.0
    %108 = vmatpush1.msra.mxu0 0.0
    %109 = vmatprep.subr.mxu0 0.0
    %110 = vmatpush1.msra.mxu0 0.0
    %111 = vmatprep.subr.mxu0 0.0
    %112 = vmatpush1.msra.mxu0 0.0
    %113 = vmatprep.subr.mxu0 0.0
    %114 = vmatpush1.msra.mxu0 0.0
    %115 = vmatprep.subr.mxu0 0.0
    %116 = vmatpush1.msra.mxu0 0.0
    %117 = vmatprep.subr.mxu0 0.0
    %118 = vmatpush1.msra.mxu0 0.0
    %119 = vmatprep.subr.mxu0 0.0
    %120 = vmatpush1.msra.mxu0 0.0
    %121 = vmatprep.subr.mxu0 0.0
    %122 = vmatpush1.msra.mxu0 0.0
    %123 = vmatprep.subr.mxu0 0.0
    %124 = vmatpush1.msra.mxu0 0.0
    %125 = vmatprep.subr.mxu0 0.0
    %126 = vmatpush1.msra.mxu0 0.0
    %127 = vmatprep.subr.mxu0 0.0
    %128 = vmatpush1.msra.mxu0 0.0
    %129 = vmatprep.subr.mxu0 0.0
    %130 = vmatpush1.msra.mxu0 0.0
    %131 = vmatprep.subr.mxu0 0.0
    %132 = vmatpush1.msra.mxu0 0.0
    %133 = vmatprep.subr.mxu0 0.0
    %134 = vmatpush1.msra.mxu0 0.0
    %135 = vmatprep.subr.mxu0 0.0
    %136 = vmatpush1.msra.mxu0 0.0
    %137 = vmatprep.subr.mxu0 0.0
    %138 = vmatpush1.msra.mxu0 0.0
    %139 = vmatprep.subr.mxu0 0.0
    %140 = vmatpush1.msra.mxu0 0.0
    %141 = vmatprep.subr.mxu0 0.0
    %142 = vmatpush1.msra.mxu0 0.0
    %143 = vmatprep.subr.mxu0 0.0
    %144 = vmatpush1.msra.mxu0 0.0
    %145 = vmatprep.subr.mxu0 0.0
    %146 = vmatpush1.msra.mxu0 0.0
    %147 = vmatprep.subr.mxu0 0.0
    %148 = vmatpush1.msra.mxu0 0.0
    %149 = vmatprep.subr.mxu0 0.0
    %150 = vmatpush1.msra.mxu0 0.0
    %151 = vmatprep.subr.mxu0 0.0
    %152 = vmatpush1.msra.mxu0 0.0
    %153 = vmatprep.subr.mxu0 0.0
    %154 = vmatpush1.msra.mxu0 0.0
    %155 = vmatprep.mubr.f32.mxu0 0.0
    %156 = vmatmul.mubr.f32.gmra.mrb[0].mxu0 %v44
    %v157 = vpop.f32.mrb[0].mxu0
    %v158 = vadd.f32 %v40, %v157
    %v159 = vpop.f32.mrb[0].mxu0
    %160 = vmatprep.mubr.f32.mxu0 0.0
    %161 = vmatmul.mubr.f32.gmra.mrb[0].mxu0 %v47
    %v162 = vpop.f32.mrb[0].mxu0
    %v163 = vadd.f32 %v40, %v162
    %v164 = vpop.f32.mrb[0].mxu0
    %165 = vmatprep.mubr.f32.mxu0 0.0
    %166 = vmatmul.mubr.f32.gmra.mrb[0].mxu0 %v50
    %v167 = vpop.f32.mrb[0].mxu0
    %v168 = vadd.f32 %v40, %v167
    %v169 = vpop.f32.mrb[0].mxu0
    %170 = vmatprep.mubr.f32.mxu0 0.0
    %171 = vmatmul.mubr.f32.gmra.mrb[0].mxu0 %v53
    %v172 = vpop.f32.mrb[0].mxu0
    %v173 = vadd.f32 %v40, %v172
    %v174 = vpop.f32.mrb[0].mxu0
    %175 = vmatprep.mubr.f32.mxu0 0.0
    %176 = vmatmul.mubr.f32.gmra.mrb[0].mxu0 %v56
    %v177 = vpop.f32.mrb[0].mxu0
    %v178 = vadd.f32 %v40, %v177
    %v179 = vpop.f32.mrb[0].mxu0
    %180 = vmatprep.mubr.f32.mxu0 0.0
    %181 = vmatmul.mubr.f32.gmra.mrb[0].mxu0 %v59
    %v182 = vpop.f32.mrb[0].mxu0
    %v183 = vadd.f32 %v40, %v182
    %v184 = vpop.f32.mrb[0].mxu0
    %185 = vmatprep.mubr.f32.mxu0 0.0
    %186 = vmatmul.mubr.f32.gmra.mrb[0].mxu0 %v62
    %v187 = vpop.f32.mrb[0].mxu0
    %v188 = vadd.f32 %v40, %v187
    %v189 = vpop.f32.mrb[0].mxu0
    %190 = vmatprep.mubr.f32.mxu0 0.0
    %191 = vmatmul.mubr.f32.gmra.mrb[0].mxu0 %v65
    %v192 = vpop.f32.mrb[0].mxu0
    %v193 = vadd.f32 %v40, %v192
    %v194 = vpop.f32.mrb[0].mxu0
    %195 = vmatprep.mubr.f32.mxu0 0.0
    %196 = vmatmul.mubr.f32.gmra.mrb[0].mxu0 %v68
    %v197 = vpop.f32.mrb[0].mxu0
    %v198 = vadd.f32 %v40, %v197
    %v199 = vpop.f32.mrb[0].mxu0
    %200 = vmatprep.mubr.f32.mxu0 0.0
    %201 = vmatmul.mubr.f32.gmra.mrb[0].mxu0 %v71
    %v202 = vpop.f32.mrb[0].mxu0
    %v203 = vadd.f32 %v40, %v202
    %v204 = vpop.f32.mrb[0].mxu0
    %205 = vmatprep.mubr.f32.mxu0 0.0
    %206 = vmatmul.mubr.f32.gmra.mrb[0].mxu0 %v74
    %v207 = vpop.f32.mrb[0].mxu0
    %v208 = vadd.f32 %v40, %v207
    %v209 = vpop.f32.mrb[0].mxu0
    %210 = vmatprep.mubr.f32.mxu0 0.0
    %211 = vmatmul.mubr.f32.gmra.mrb[0].mxu0 %v77
    %v212 = vpop.f32.mrb[0].mxu0
    %v213 = vadd.f32 %v40, %v212
    %v214 = vpop.f32.mrb[0].mxu0
    %215 = vmatprep.mubr.f32.mxu0 0.0
    %216 = vmatmul.mubr.f32.gmra.mrb[0].mxu0 %v80
    %v217 = vpop.f32.mrb[0].mxu0
    %v218 = vadd.f32 %v40, %v217
    %v219 = vpop.f32.mrb[0].mxu0
    %220 = vmatprep.mubr.f32.mxu0 0.0
    %221 = vmatmul.mubr.f32.gmra.mrb[0].mxu0 %v83
    %v222 = vpop.f32.mrb[0].mxu0
    %v223 = vadd.f32 %v40, %v222
    %v224 = vpop.f32.mrb[0].mxu0
    %225 = vmatprep.mubr.f32.mxu0 0.0
    %226 = vmatmul.mubr.f32.gmra.mrb[0].mxu0 %v86
    %v227 = vpop.f32.mrb[0].mxu0
    %v228 = vadd.f32 %v40, %v227
    %v229 = vpop.f32.mrb[0].mxu0
    %230 = vmatprep.mubr.f32.mxu0 0.0
    %231 = vmatmul.mubr.f32.gmra.mrb[0].mxu0 %v89
    %v232 = vpop.f32.mrb[0].mxu0
    %v233 = vadd.f32 %v40, %v232
    %v234 = vpop.f32.mrb[0].mxu0
    %235 = vdwg.mxu0
    %v236 = vpack.c.bf16 %v163, %v158
    %v237 = vpack.c.bf16 %v173, %v168
    %v238 = vpack.c.bf16 %v183, %v178
    %v239 = vpack.c.bf16 %v193, %v188
    %v240 = vpack.c.bf16 %v203, %v198
    %v241 = vpack.c.bf16 %v213, %v208
    %v242 = vpack.c.bf16 %v223, %v218
    %v243 = vpack.c.bf16 %v233, %v228
    %v252 = vunpack.c.l.b16 %v236
    %v253 = vunpack.c.h.b16 %v236
    %v254 = vunpack.c.l.b16 %v237
    %v255 = vunpack.c.h.b16 %v237
    %v256 = vunpack.c.l.b16 %v238
    %v257 = vunpack.c.h.b16 %v238
    %v258 = vunpack.c.l.b16 %v239
    %v259 = vunpack.c.h.b16 %v239
    %v260 = vunpack.c.l.b16 %v240
    %v261 = vunpack.c.h.b16 %v240
    %v262 = vunpack.c.l.b16 %v241
    %v263 = vunpack.c.h.b16 %v241
    %v264 = vunpack.c.l.b16 %v242
    %v265 = vunpack.c.h.b16 %v242
    %v266 = vunpack.c.l.b16 %v243
    %v267 = vunpack.c.h.b16 %v243
    %v268 = vpack.c.b16 %v252, %v252
    %v269 = vpack.c.b16 %v253, %v253
    %v270 = vpack.c.b16 %v254, %v254
    %v271 = vpack.c.b16 %v255, %v255
    %v272 = vpack.c.b16 %v256, %v256
    %v273 = vpack.c.b16 %v257, %v257
    %v274 = vpack.c.b16 %v258, %v258
    %v275 = vpack.c.b16 %v259, %v259
    %v276 = vpack.c.b16 %v260, %v260
    %v277 = vpack.c.b16 %v261, %v261
    %v278 = vpack.c.b16 %v262, %v262
    %v279 = vpack.c.b16 %v263, %v263
    %v280 = vpack.c.b16 %v264, %v264
    %v281 = vpack.c.b16 %v265, %v265
    %v282 = vpack.c.b16 %v266, %v266
    %v283 = vpack.c.b16 %v267, %v267
    %300 = vst [vmem:[#allocation2] sm:$0xf] %v268
    %301 = vst [vmem:[#allocation2 + $0x4] sm:$0xf] %v269
    %302 = vst [vmem:[#allocation2 + $0x8] sm:$0xf] %v270
    %303 = vst [vmem:[#allocation2 + $0xc] sm:$0xf] %v271
    %304 = vst [vmem:[#allocation2 + $0x10] sm:$0xf] %v272
    %305 = vst [vmem:[#allocation2 + $0x14] sm:$0xf] %v273
    %306 = vst [vmem:[#allocation2 + $0x18] sm:$0xf] %v274
    %307 = vst [vmem:[#allocation2 + $0x1c] sm:$0xf] %v275
    %308 = vst [vmem:[#allocation2 + $0x20] sm:$0xf] %v276
    %309 = vst [vmem:[#allocation2 + $0x24] sm:$0xf] %v277
    %310 = vst [vmem:[#allocation2 + $0x28] sm:$0xf] %v278
    %311 = vst [vmem:[#allocation2 + $0x2c] sm:$0xf] %v279
    %312 = vst [vmem:[#allocation2 + $0x30] sm:$0xf] %v280
    %313 = vst [vmem:[#allocation2 + $0x34] sm:$0xf] %v281
    %314 = vst [vmem:[#allocation2 + $0x38] sm:$0xf] %v282
    %315 = vst [vmem:[#allocation2 + $0x3c] sm:$0xf] %v283
    // Predicated region
    $region14: #{tpu_custom_call.1} parent=1 // pred_check
      _
    $region15: #{tpu_custom_call.1} parent=1 // pred_check_branch
      %317 = sbr.rel (0) target = $region17
    $region16: #{tpu_custom_call.1} parent=1 // pred_region
      %s319 = ssub.s32 1024, 1024
      %320 = vsyncadd [#allocation3], %s319
      %s321 = sshll.u32 [#allocation2], 4
      %s322 = int_to_ptr.vmem [resolvable:$true] %s321
      %327 = dma.vmem_to_hbm [thread:$0]  %s322, 1024, %s3, [#allocation3], 64, 64, 4
    $region17: #{tpu_custom_call.1} parent=1 // pred_fallthru
      _
    // Predicated region
    $region18: #{tpu_custom_call.1} parent=1 // pred_check
      _
    $region19: #{tpu_custom_call.1} parent=1 // pred_check_branch
      %329 = sbr.rel (0) target = $region21
    $region20: #{tpu_custom_call.1} parent=1 // pred_region
      %330 = dma.done [#allocation3], 1024
    $region21: #{tpu_custom_call.1} parent=1 // pred_fallthru
      _
    %331 = vsyncpa [#allocation3], 1

</llo_original>
